<compile_context>
chip_gen: v5e
topology: v5e:2x2
jax: 0.10.0
libtpu: 0.0.40
codegen_flags: <defaults>
</compile_context>

<pallas_src>
import functools

import jax
import jax.numpy as jnp
from jax.experimental import pallas as pl
from jax.experimental.pallas import tpu as pltpu

EPS = 1e-8
_LANE = 128
_SUBLANE = 8
_TARGET_BLOCK_BYTES = 2 * 1024 * 1024      # ~2 MiB I/O block per grid step
_FALLBACK_VMEM = 64 * 1024 * 1024          # smallest physical VMEM (v7x)


def _round_up(x, m):
    return (x + m - 1) // m * m


@functools.lru_cache(maxsize=1)
def _vmem_budget():
    """Generation-aware scoped-VMEM budget (~75% of physical capacity)."""
    try:
        cap = int(pltpu.get_tpu_info().vmem_capacity_bytes)
    except Exception:
        cap = 0
    if cap <= 0:
        cap = _FALLBACK_VMEM
    return cap * 3 // 4


# ---------------------------------------------------------------------------
# Single-pass kernel: whole batch resident per (N, TILE_D) feature slab.
# ---------------------------------------------------------------------------
def _dice_kernel(alpha_ref, x_ref, gamma_ref, beta_ref, o_ref):
    x = x_ref[...].astype(jnp.float32)                      # (N, TILE_D)
    inv_n = 1.0 / x.shape[0]
    mean = jnp.sum(x, axis=0, keepdims=True) * inv_n        # (1, TILE_D)
    # E[x^2] - mean^2: avoids materializing (x - mean) alongside x; clamp >= 0
    # against rare catastrophic cancellation.
    var = jnp.maximum(jnp.sum(x * x, axis=0, keepdims=True) * inv_n - mean * mean, 0.0)
    # Fold normalize + affine into a per-element FMA: y = x * a + b.
    a = jax.lax.rsqrt(var + EPS) * gamma_ref[...].astype(jnp.float32)
    b = beta_ref[...].astype(jnp.float32) - mean * a
    y = x * a + b
    # sigmoid as a single EUP transcendental: 0.5 * (tanh(y/2) + 1).
    p = 0.5 * jnp.tanh(0.5 * y) + 0.5
    alpha = alpha_ref[0]
    # p*x + (1-p)*alpha*x  ==  x * (alpha + (1 - alpha) * p)
    o_ref[...] = (x * (alpha + (1.0 - alpha) * p)).astype(o_ref.dtype)


# ---------------------------------------------------------------------------
# Two-pass (large-batch) path.
# Pass 1: grid (D tiles, N tiles) — N last, "arbitrary"; accumulate per-feature
#         sum / sumsq in VMEM scratch, emit folded (a, b) = (inv_std*gamma,
#         beta - mean*a) as a (2, D) f32 array at the final N step.
# Pass 2: elementwise apply, fully parallel grid.
# ---------------------------------------------------------------------------
def _stats_kernel(n_rows, x_ref, gamma_ref, beta_ref, ab_ref, sum_sc, sq_sc):
    ni = pl.program_id(1)

    @pl.when(ni == 0)
    def _():
        sum_sc[...] = jnp.zeros_like(sum_sc)
        sq_sc[...] = jnp.zeros_like(sq_sc)

    x = x_ref[...].astype(jnp.float32)                       # (TILE_N, TILE_D)
    tile_n = x.shape[0]
    # Mask rows beyond the true batch size (ragged last N block reads garbage).
    row = jax.lax.broadcasted_iota(jnp.int32, x.shape, 0) + ni * tile_n
    x = jnp.where(row < n_rows, x, 0.0)
    sum_sc[...] += jnp.sum(x, axis=0, keepdims=True)
    sq_sc[...] += jnp.sum(x * x, axis=0, keepdims=True)

    @pl.when(ni == pl.num_programs(1) - 1)
    def _():
        inv_n = 1.0 / n_rows
        mean = sum_sc[...] * inv_n
        var = jnp.maximum(sq_sc[...] * inv_n - mean * mean, 0.0)
        a = jax.lax.rsqrt(var + EPS) * gamma_ref[...].astype(jnp.float32)
        b = beta_ref[...].astype(jnp.float32) - mean * a
        ab_ref[pl.ds(0, 1), :] = a
        ab_ref[pl.ds(1, 1), :] = b


def _apply_kernel(alpha_ref, x_ref, ab_ref, o_ref):
    x = x_ref[...].astype(jnp.float32)                       # (TILE_N, TILE_D)
    a = ab_ref[pl.ds(0, 1), :]
    b = ab_ref[pl.ds(1, 1), :]
    p = 0.5 * jnp.tanh(0.5 * (x * a + b)) + 0.5
    alpha = alpha_ref[0]
    o_ref[...] = (x * (alpha + (1.0 - alpha) * p)).astype(o_ref.dtype)


# ---------------------------------------------------------------------------
# Tile sizing.
# ---------------------------------------------------------------------------
def _single_pass_tile_d(n, d, itemsize, budget):
    # Live VMEM per step per lane-column: double-buffered in + out blocks in
    # the I/O dtype plus ~3 full-tile f32 temporaries.
    per_col = n * (4 * itemsize + 3 * 4)
    max_tile = (budget // max(per_col, 1)) // _LANE * _LANE
    if max_tile < _LANE:
        return None                       # (N, 128) slab doesn't fit -> two-pass
    target = max(_LANE,
                 (_TARGET_BLOCK_BYTES // max(n * itemsize, 1)) // _LANE * _LANE)
    tile = min(target, max_tile, _round_up(d, _LANE))
    if d >= 2 * _LANE:
        # Keep >= 2 feature tiles so the "parallel" axis can split across the
        # two TensorCores of a v7x chip (free on single-TC v5e/v6e).
        tile = min(tile, _round_up(pl.cdiv(d, 2), _LANE))
    return max(tile, _LANE)


def _two_pass_tiles(n, d, itemsize, budget):
    tile_d = min(512, _round_up(d, _LANE))
    if d >= 2 * _LANE:
        tile_d = min(tile_d, _round_up(pl.cdiv(d, 2), _LANE))
    per_row = tile_d * (4 * itemsize + 3 * 4)
    max_n = max(_SUBLANE, (budget // max(per_row, 1)) // _SUBLANE * _SUBLANE)
    target_n = max(_SUBLANE,
                   (_TARGET_BLOCK_BYTES // max(tile_d * itemsize, 1))
                   // _SUBLANE * _SUBLANE)
    tile_n = min(max_n, target_n, _round_up(n, _SUBLANE))
    return tile_n, tile_d


# ---------------------------------------------------------------------------
# Public wrapper.
# ---------------------------------------------------------------------------
@functools.partial(jax.jit, static_argnames=("tile_d", "tile_n", "force_two_pass"))
def dice(x, gamma, beta, alpha, *, tile_d=None, tile_n=None, force_two_pass=False):
    """Dice activation.

    x:     (N, D) float array (f32 or bf16; output keeps x.dtype)
    gamma: (D,) BatchNorm1d weight
    beta:  (D,) BatchNorm1d bias
    alpha: scalar Dice parameter
    """
    n, d = x.shape
    out_dtype = x.dtype
    itemsize = x.dtype.itemsize
    budget = _vmem_budget()

    gamma2 = gamma.reshape(1, d).astype(jnp.float32)
    beta2 = beta.reshape(1, d).astype(jnp.float32)
    alpha1 = jnp.asarray(alpha, dtype=jnp.float32).reshape(1)

    if force_two_pass:
        single_td = None
    elif tile_d is not None:
        single_td = int(tile_d)
    else:
        single_td = _single_pass_tile_d(n, d, itemsize, budget)

    if single_td is not None:
        td = _round_up(single_td, _LANE)
        return pl.pallas_call(
            _dice_kernel,
            out_shape=jax.ShapeDtypeStruct((n, d), out_dtype),
            grid=(pl.cdiv(d, td),),
            in_specs=[
                pl.BlockSpec(memory_space=pltpu.SMEM),        # alpha scalar
                pl.BlockSpec((n, td), lambda j: (0, j)),      # X feature slab
                pl.BlockSpec((1, td), lambda j: (0, j)),      # gamma
                pl.BlockSpec((1, td), lambda j: (0, j)),      # beta
            ],
            out_specs=pl.BlockSpec((n, td), lambda j: (0, j)),
            compiler_params=pltpu.CompilerParams(
                dimension_semantics=("parallel",),            # D tiles independent
                vmem_limit_bytes=budget,
            ),
        )(alpha1, x, gamma2, beta2)

    # -------- two-pass path (batch too large for a single resident slab) ----
    auto_tn, auto_td = _two_pass_tiles(n, d, itemsize, budget)
    tn = _round_up(int(tile_n), _SUBLANE) if tile_n is not None else auto_tn
    td = _round_up(int(tile_d), _LANE) if tile_d is not None else auto_td
    num_d = pl.cdiv(d, td)
    num_n = pl.cdiv(n, tn)

    ab = pl.pallas_call(
        functools.partial(_stats_kernel, n),
        out_shape=jax.ShapeDtypeStruct((2, d), jnp.float32),
        grid=(num_d, num_n),                                  # N innermost
        in_specs=[
            pl.BlockSpec((tn, td), lambda j, i: (i, j)),      # X
            pl.BlockSpec((1, td), lambda j, i: (0, j)),       # gamma
            pl.BlockSpec((1, td), lambda j, i: (0, j)),       # beta
        ],
        out_specs=pl.BlockSpec((2, td), lambda j, i: (0, j)), # resident over N
        scratch_shapes=[pltpu.VMEM((1, td), jnp.float32),
                        pltpu.VMEM((1, td), jnp.float32)],
        compiler_params=pltpu.CompilerParams(
            dimension_semantics=("parallel", "arbitrary"),
            vmem_limit_bytes=budget,
        ),
    )(x, gamma2, beta2)

    return pl.pallas_call(
        _apply_kernel,
        out_shape=jax.ShapeDtypeStruct((n, d), out_dtype),
        grid=(num_n, num_d),
        in_specs=[
            pl.BlockSpec(memory_space=pltpu.SMEM),            # alpha scalar
            pl.BlockSpec((tn, td), lambda i, j: (i, j)),      # X
            pl.BlockSpec((2, td), lambda i, j: (0, j)),       # folded (a, b)
        ],
        out_specs=pl.BlockSpec((tn, td), lambda i, j: (i, j)),
        compiler_params=pltpu.CompilerParams(
            dimension_semantics=("parallel", "parallel"),
            vmem_limit_bytes=budget,
        ),
    )(alpha1, x, ab)


def dice_ref(x, gamma, beta, alpha):
    xf = x.astype(jnp.float32)
    mean = jnp.mean(xf, axis=0, keepdims=True)
    var = jnp.mean((xf - mean) ** 2, axis=0, keepdims=True)
    y = (xf - mean) / jnp.sqrt(var + EPS) * gamma.reshape(1, -1) + beta.reshape(1, -1)
    p = jax.nn.sigmoid(y)
    return (p * xf + (1.0 - p) * alpha * xf).astype(x.dtype)


if __name__ == "__main__":
    key = jax.random.PRNGKey(0)
    kx, kg, kb, kx2 = jax.random.split(key, 4)

    # Small shapes: batch=16, input_dim=200 exercises ragged lane tiles.
    N, D = 16, 200
    x = jax.random.normal(kx, (N, D), dtype=jnp.float32)
    gamma = 1.0 + 0.1 * jax.random.normal(kg, (D,), dtype=jnp.float32)
    beta = 0.1 * jax.random.normal(kb, (D,), dtype=jnp.float32)
    alpha = 0.25

    ref = dice_ref(x, gamma, beta, alpha)

    # Auto single-pass path (no wrapper pad/slice; ragged lanes masked on store).
    out = dice(x, gamma, beta, alpha)
    jax.block_until_ready(out)
    assert out.shape == x.shape and out.dtype == x.dtype
    assert jnp.allclose(out, ref, atol=2e-5, rtol=2e-5), "f32 auto-path mismatch"

    # Explicit small tile -> multi-step feature grid with a ragged last tile.
    out_t = dice(x, gamma, beta, alpha, tile_d=128)
    jax.block_until_ready(out_t)
    assert jnp.allclose(out_t, ref, atol=2e-5, rtol=2e-5), "f32 tiled-path mismatch"

    # bf16 I/O path (DMA in bf16, compute stays f32 inside the kernel).
    xb = x.astype(jnp.bfloat16)
    out_b = dice(xb, gamma, beta, alpha)
    jax.block_until_ready(out_b)
    ref_b = dice_ref(xb, gamma, beta, alpha)
    assert out_b.dtype == jnp.bfloat16
    assert jnp.allclose(out_b.astype(jnp.float32), ref_b.astype(jnp.float32),
                        atol=2e-2, rtol=2e-2), "bf16 mismatch"

    # Two-pass (large-batch) path, forced at a small shape: exercises N-tiled
    # stats accumulation with ragged batch (20 rows, tile_n=8) and ragged
    # feature tiles (200 cols, tile_d=128).
    N2 = 20
    x2 = jax.random.normal(kx2, (N2, D), dtype=jnp.float32)
    out2 = dice(x2, gamma, beta, alpha, force_two_pass=True, tile_n=8, tile_d=128)
    jax.block_until_ready(out2)
    ref2 = dice_ref(x2, gamma, beta, alpha)
    assert jnp.allclose(out2, ref2, atol=2e-5, rtol=2e-5), "two-pass mismatch"

    print("KERNEL_OK")
</pallas_src>

<mosaic_0001>
module attributes {stable_mosaic.version = 11 : i64} {
  func.func @_dice_kernel(%arg0: i32, %arg1: memref<1xf32, #tpu.memory_space<smem>>, %arg2: memref<16x256xf32, #tpu.memory_space<vmem>>, %arg3: memref<1x256xf32, #tpu.memory_space<vmem>>, %arg4: memref<1x256xf32, #tpu.memory_space<vmem>>, %arg5: memref<16x256xf32, #tpu.memory_space<vmem>>) attributes {dimension_semantics = [#tpu.dimension_semantics<parallel>], iteration_bounds = array<i64: 1>, scalar_prefetch = 0 : i64, scratch_operands = 0 : i64, tpu.core_type = #tpu.core_type<tc>, window_params = [{transform_indices = @transform_0, window_bounds = array<i64: 1>}, {transform_indices = @transform_1, window_bounds = array<i64: 16, 256>}, {transform_indices = @transform_2, window_bounds = array<i64: 1, 256>}, {transform_indices = @transform_3, window_bounds = array<i64: 1, 256>}, {transform_indices = @transform_4, window_bounds = array<i64: 16, 256>}]} {
    %c0 = arith.constant 0 : index
    %c0_0 = arith.constant 0 : index
    %0 = vector.load %arg2[%c0, %c0_0] : memref<16x256xf32, #tpu.memory_space<vmem>>, vector<16x256xf32>
    %cst = arith.constant dense<0.000000e+00> : vector<256xf32>
    %1 = vector.multi_reduction <add>, %0, %cst [0] : vector<16x256xf32> to vector<256xf32>
    %2 = vector.shape_cast %1 : vector<256xf32> to vector<1x256xf32>
    %cst_1 = arith.constant 6.250000e-02 : f32
    %3 = vector.broadcast %cst_1 : f32 to vector<1x256xf32>
    %4 = arith.mulf %2, %3 : vector<1x256xf32>
    %5 = arith.mulf %0, %0 : vector<16x256xf32>
    %cst_2 = arith.constant dense<0.000000e+00> : vector<256xf32>
    %6 = vector.multi_reduction <add>, %5, %cst_2 [0] : vector<16x256xf32> to vector<256xf32>
    %7 = vector.shape_cast %6 : vector<256xf32> to vector<1x256xf32>
    %cst_3 = arith.constant 6.250000e-02 : f32
    %8 = vector.broadcast %cst_3 : f32 to vector<1x256xf32>
    %9 = arith.mulf %7, %8 : vector<1x256xf32>
    %10 = arith.mulf %4, %4 : vector<1x256xf32>
    %11 = arith.subf %9, %10 : vector<1x256xf32>
    %cst_4 = arith.constant 0.000000e+00 : f32
    %12 = vector.broadcast %cst_4 : f32 to vector<1x256xf32>
    %13 = arith.maximumf %11, %12 : vector<1x256xf32>
    %cst_5 = arith.constant 9.99999993E-9 : f32
    %14 = vector.broadcast %cst_5 : f32 to vector<1x256xf32>
    %15 = arith.addf %13, %14 : vector<1x256xf32>
    %16 = math.rsqrt %15 : vector<1x256xf32>
    %c0_6 = arith.constant 0 : index
    %c0_7 = arith.constant 0 : index
    %17 = vector.load %arg3[%c0_6, %c0_7] : memref<1x256xf32, #tpu.memory_space<vmem>>, vector<1x256xf32>
    %18 = arith.mulf %16, %17 : vector<1x256xf32>
    %c0_8 = arith.constant 0 : index
    %c0_9 = arith.constant 0 : index
    %19 = vector.load %arg4[%c0_8, %c0_9] : memref<1x256xf32, #tpu.memory_space<vmem>>, vector<1x256xf32>
    %20 = arith.mulf %4, %18 : vector<1x256xf32>
    %21 = arith.subf %19, %20 : vector<1x256xf32>
    %22 = vector.broadcast %18 : vector<1x256xf32> to vector<16x256xf32>
    %23 = arith.mulf %0, %22 : vector<16x256xf32>
    %24 = vector.broadcast %21 : vector<1x256xf32> to vector<16x256xf32>
    %25 = arith.addf %23, %24 : vector<16x256xf32>
    %cst_10 = arith.constant 5.000000e-01 : f32
    %26 = vector.broadcast %cst_10 : f32 to vector<16x256xf32>
    %27 = arith.mulf %26, %25 : vector<16x256xf32>
    %28 = math.tanh %27 : vector<16x256xf32>
    %cst_11 = arith.constant 5.000000e-01 : f32
    %29 = vector.broadcast %cst_11 : f32 to vector<16x256xf32>
    %30 = arith.mulf %29, %28 : vector<16x256xf32>
    %cst_12 = arith.constant 5.000000e-01 : f32
    %31 = vector.broadcast %cst_12 : f32 to vector<16x256xf32>
    %32 = arith.addf %30, %31 : vector<16x256xf32>
    %c0_13 = arith.constant 0 : index
    %33 = memref.load %arg1[%c0_13] : memref<1xf32, #tpu.memory_space<smem>>
    %cst_14 = arith.constant 1.000000e+00 : f32
    %34 = arith.subf %cst_14, %33 : f32
    %35 = vector.broadcast %34 : f32 to vector<16x256xf32>
    %36 = arith.mulf %35, %32 : vector<16x256xf32>
    %37 = vector.broadcast %33 : f32 to vector<16x256xf32>
    %38 = arith.addf %37, %36 : vector<16x256xf32>
    %39 = arith.mulf %0, %38 : vector<16x256xf32>
    %c0_15 = arith.constant 0 : index
    %c0_16 = arith.constant 0 : index
    %40 = vector.load %arg5[%c0_15, %c0_16] : memref<16x256xf32, #tpu.memory_space<vmem>>, vector<16x256xf32>
    tpu.vector_store %arg5[%c0_15, %c0_16], %39 {strides = array<i32>} : memref<16x256xf32, #tpu.memory_space<vmem>>, vector<16x256xf32>,
    return
  }
  func.func @transform_0(%arg0: i32) -> i32 {
    %c0_i32 = arith.constant 0 : i32
    %c0_i32_0 = arith.constant 0 : i32
    return %c0_i32 : i32
  }
  func.func @transform_1(%arg0: i32) -> (i32, i32) {
    %c0_i32 = arith.constant 0 : i32
    %c0_i32_0 = arith.constant 0 : i32
    return %c0_i32, %arg0 : i32, i32
  }
  func.func @transform_2(%arg0: i32) -> (i32, i32) {
    %c0_i32 = arith.constant 0 : i32
    %c0_i32_0 = arith.constant 0 : i32
    return %c0_i32, %arg0 : i32, i32
  }
  func.func @transform_3(%arg0: i32) -> (i32, i32) {
    %c0_i32 = arith.constant 0 : i32
    %c0_i32_0 = arith.constant 0 : i32
    return %c0_i32, %arg0 : i32, i32
  }
  func.func @transform_4(%arg0: i32) -> (i32, i32) {
    %c0_i32 = arith.constant 0 : i32
    %c0_i32_0 = arith.constant 0 : i32
    return %c0_i32, %arg0 : i32, i32
  }
}

</mosaic_0001>

<llo_original>
// kernel: dice.1
$region0: #{dice.1}
  #allocation0 [shape = 'u32[]', space=smem, size = 0x4, offset = 0x4, fixed_abs, tag = 'smem constant byte address 0x4 - core index']
  #allocation1 [shape = 'u32[72,128]{1,0:T(1,128)}', space=vmem, size = 0x9000, scoped, tag = 'internal scratch']
  #allocation2 [shape = 'f32[1]{0:T(128)S(6)}', space=smem, size = 0x200, scoped, tag = 'scoped memory for dice.1']
  %s0 = inlined_call_operand.<no memory space> [shape: f32[1], index: 0, kind: input, shape index: {}]
  %s1 = inlined_call_operand.hbm [shape: f32[16,200], index: 1, kind: input, shape index: {}]
  %s2 = inlined_call_operand.vmem [shape: f32[1,200], index: 2, kind: input, shape index: {}]
  %s3 = inlined_call_operand.vmem [shape: f32[1,200], index: 3, kind: input, shape index: {}]
  %s4 = inlined_call_operand.hbm [shape: f32[16,200], index: 4, kind: output, shape index: {}]
  %s5 = sld [smem:[#allocation0]]
  $region30: #{dice.1} parent=0
    _
  %s7 = ssub.s32 1, %s5
  %s8 = scalar_select 0, %s7, %s5
  %9 = sst [smem:[#allocation2]] %s0
  $region1: #{dice.1} parent=0
    #allocation3 [shape = 'u8[16384]{0}', space=vmem, size = 0x4000, scoped, tag = 'input window, operand 1, single buffered']
    #allocation4 [shape = 's32[1]{0}', space=sflag, size = 0x4, scoped, tag = 'scoped memory for dice.1']
    #allocation5 [shape = 's32[1]{0}', space=sflag, size = 0x4, scoped, tag = 'scoped memory for dice.1']
    #allocation6 [shape = 'u8[16384]{0}', space=vmem, size = 0x4000, scoped, tag = 'output window, operand 0, single buffered']
    %10 = vsyncpa [#allocation4], 0
    %11 = vsyncpa [#allocation5], 0
    // Predicated region
    $region2: #{dice.1} parent=1 // pred_check
      _
    $region3: #{dice.1} parent=1 // pred_check_branch
      %13 = sbr.rel (0) target = $region5
    $region4: #{dice.1} parent=1 // pred_region
      _
    $region5: #{dice.1} parent=1 // pred_fallthru
      _
    // Predicated region
    $region6: #{dice.1} parent=1 // pred_check
      _
    $region7: #{dice.1} parent=1 // pred_check_branch
      %15 = sbr.rel (0) target = $region9
    $region8: #{dice.1} parent=1 // pred_region
      %17 = vsyncadd [#allocation4], 0
      %s18 = sshll.u32 %s1, 4
      %s19 = int_to_ptr.hbm [resolvable:$true] %s18
      %s20 = sshll.u32 [#allocation3], 4
      %s21 = int_to_ptr.vmem [resolvable:$true] %s20
      %26 = dma.hbm_to_vmem [thread:$0]  %s19, 512, %s21, [#allocation4], 256, 256, 16
    $region9: #{dice.1} parent=1 // pred_fallthru
      _
    // Predicated region
    $region10: #{dice.1} parent=1 // pred_check
      _
    $region11: #{dice.1} parent=1 // pred_check_branch
      %28 = sbr.rel (0) target = $region13
    $region12: #{dice.1} parent=1 // pred_region
      _
    $region13: #{dice.1} parent=1 // pred_fallthru
      _
    // Predicated region
    $region14: #{dice.1} parent=1 // pred_check
      _
    $region15: #{dice.1} parent=1 // pred_check_branch
      %30 = sbr.rel (0) target = $region17
    $region16: #{dice.1} parent=1 // pred_region
      _
    $region17: #{dice.1} parent=1 // pred_fallthru
      _
    // Predicated region
    $region18: #{dice.1} parent=1 // pred_check
      _
    $region19: #{dice.1} parent=1 // pred_check_branch
      %32 = sbr.rel (0) target = $region21
    $region20: #{dice.1} parent=1 // pred_region
      %34 = dma.done [#allocation4], 512
    $region21: #{dice.1} parent=1 // pred_fallthru
      _
    %v35 = vld [vmem:[#allocation3] sm:$0xff]
    %v36 = vld [vmem:[#allocation3 + $0x8] sm:$0xff]
    %v37 = vld [vmem:[#allocation3 + $0x10] sm:$0xff]
    %v38 = vld [vmem:[#allocation3 + $0x18] sm:$0xff]
    %v39 = vadd.f32 %v35, %v37
    %v40 = vrot.slane %v39, 4
    %v41 = vadd.f32 %v39, %v40
    %v42 = vrot.slane %v41, 2
    %v43 = vadd.f32 %v41, %v42
    %v44 = vrot.slane %v43, 1
    %v45 = vadd.f32 %v43, %v44
    %v46 = vadd.f32 %v36, %v38
    %v47 = vrot.slane %v46, 4
    %v48 = vadd.f32 %v46, %v47
    %v49 = vrot.slane %v48, 2
    %v50 = vadd.f32 %v48, %v49
    %v51 = vrot.slane %v50, 1
    %v52 = vadd.f32 %v50, %v51
    %v53 = vmul.f32 %v45, 0.0625
    %v54 = vmul.f32 %v52, 0.0625
    %v55 = vmul.f32 %v35, %v35
    %v56 = vmul.f32 %v36, %v36
    %v57 = vmul.f32 %v37, %v37
    %v58 = vmul.f32 %v38, %v38
    %v59 = vadd.f32 %v55, %v57
    %v60 = vrot.slane %v59, 4
    %v61 = vadd.f32 %v59, %v60
    %v62 = vrot.slane %v61, 2
    %v63 = vadd.f32 %v61, %v62
    %v64 = vrot.slane %v63, 1
    %v65 = vadd.f32 %v63, %v64
    %v66 = vadd.f32 %v56, %v58
    %v67 = vrot.slane %v66, 4
    %v68 = vadd.f32 %v66, %v67
    %v69 = vrot.slane %v68, 2
    %v70 = vadd.f32 %v68, %v69
    %v71 = vrot.slane %v70, 1
    %v72 = vadd.f32 %v70, %v71
    %v73 = vmul.f32 %v65, 0.0625
    %v74 = vmul.f32 %v72, 0.0625
    %v75 = vmul.f32 %v53, %v53
    %v76 = vmul.f32 %v54, %v54
    %v77 = vsub.f32 %v73, %v75
    %v78 = vsub.f32 %v74, %v76
    %v79 = vmax.f32 %v77, 0.0
    %v80 = vmax.f32 %v78, 0.0
    %v81 = vadd.f32 %v79, 1e-08
    %v82 = vadd.f32 %v80, 1e-08
    %v83 = vrsqrt.pop %v81
    %v84 = vmul.f32 %v83, %v81
    %v85 = vmul.f32 %v84, %v83
    %v86 = vmul.f32 0.5, %v85
    %v87 = vsub.f32 1.5, %v86
    %v88 = vmul.f32 %v83, %v87
    %vm89 = vweird.f32 %v81
    %vm90 = vweird.f32 %v83
    %vm91 = vmor %vm89, %vm90
    %v92 = vsel %vm91, %v83, %v88
    %v93 = vrsqrt.pop %v82
    %v94 = vmul.f32 %v93, %v82
    %v95 = vmul.f32 %v94, %v93
    %v96 = vmul.f32 0.5, %v95
    %v97 = vsub.f32 1.5, %v96
    %v98 = vmul.f32 %v93, %v97
    %vm99 = vweird.f32 %v82
    %vm100 = vweird.f32 %v93
    %vm101 = vmor %vm99, %vm100
    %v102 = vsel %vm101, %v93, %v98
    %v103 = vld [vmem:[%s2] sm:$0x3]
    %v105 = vperm.slane %v103, 0
    %v106 = vperm.slane %v103, 1
    %v109 = vmul.f32 %v92, %v105
    %v110 = vmul.f32 %v102, %v106
    %v111 = vld [vmem:[%s3] sm:$0x3]
    %v112 = vmul.f32 %v53, %v109
    %v113 = vmul.f32 %v54, %v110
    %v116 = vrot.slane %v113, 7
    %vm117 = vcmask 1040384
    %v118 = vsel %vm117, %v112, %v116
    %v120 = vsub.f32 %v111, %v118
    %v121 = vperm.slane %v109, 0
    %v122 = vperm.slane %v110, 0
    %v123 = vmul.f32 %v35, %v121
    %v124 = vmul.f32 %v36, %v122
    %v125 = vmul.f32 %v37, %v121
    %v126 = vmul.f32 %v38, %v122
    %v128 = vperm.slane %v120, 0
    %v129 = vperm.slane %v120, 1
    %v132 = vadd.f32 %v123, %v128
    %v133 = vadd.f32 %v124, %v129
    %v134 = vadd.f32 %v125, %v128
    %v135 = vadd.f32 %v126, %v129
    %v136 = vmul.f32 %v132, 0.5
    %v137 = vmul.f32 %v133, 0.5
    %v138 = vmul.f32 %v134, 0.5
    %v139 = vmul.f32 %v135, 0.5
    %v140 = vtanh.pop %v136
    %v141 = vtanh.pop %v137
    %v142 = vtanh.pop %v138
    %v143 = vtanh.pop %v139
    %v144 = vmul.f32 %v140, 0.5
    %v145 = vmul.f32 %v141, 0.5
    %v146 = vmul.f32 %v142, 0.5
    %v147 = vmul.f32 %v143, 0.5
    %v148 = vadd.f32 %v144, 0.5
    %v149 = vadd.f32 %v145, 0.5
    %v150 = vadd.f32 %v146, 0.5
    %v151 = vadd.f32 %v147, 0.5
    %s152 = sld [smem:[#allocation2]]
    %s153 = ssub.f32 1.0, %s152
    %v154 = vstv %s153
    %v155 = vmul.f32 %v154, %v148
    %v156 = vmul.f32 %v154, %v149
    %v157 = vmul.f32 %v154, %v150
    %v158 = vmul.f32 %v154, %v151
    %v159 = vstv %s152
    %v160 = vadd.f32 %v159, %v155
    %v161 = vadd.f32 %v159, %v156
    %v162 = vadd.f32 %v159, %v157
    %v163 = vadd.f32 %v159, %v158
    %v164 = vmul.f32 %v35, %v160
    %v165 = vmul.f32 %v36, %v161
    %v166 = vmul.f32 %v37, %v162
    %v167 = vmul.f32 %v38, %v163
    %168 = vst [vmem:[#allocation6] sm:$0xff] %v164
    %169 = vst [vmem:[#allocation6 + $0x8] sm:$0xff] %v165
    %170 = vst [vmem:[#allocation6 + $0x10] sm:$0xff] %v166
    %171 = vst [vmem:[#allocation6 + $0x18] sm:$0xff] %v167
    // Predicated region
    $region22: #{dice.1} parent=1 // pred_check
      _
    $region23: #{dice.1} parent=1 // pred_check_branch
      %173 = sbr.rel (0) target = $region25
    $region24: #{dice.1} parent=1 // pred_region
      %175 = vsyncadd [#allocation5], 0
      %s176 = sshll.u32 [#allocation6], 4
      %s177 = int_to_ptr.vmem [resolvable:$true] %s176
      %s178 = sshll.u32 %s4, 4
      %s179 = int_to_ptr.hbm [resolvable:$true] %s178
      %184 = dma.vmem_to_hbm [thread:$0]  %s177, 512, %s179, [#allocation5], 256, 256, 16
    $region25: #{dice.1} parent=1 // pred_fallthru
      _
    // Predicated region
    $region26: #{dice.1} parent=1 // pred_check
      _
    $region27: #{dice.1} parent=1 // pred_check_branch
      %186 = sbr.rel (0) target = $region29
    $region28: #{dice.1} parent=1 // pred_region
      %188 = dma.done [#allocation5], 512
    $region29: #{dice.1} parent=1 // pred_fallthru
      _
    %189 = vsyncpa [#allocation4], 1
    %190 = vsyncpa [#allocation5], 1

</llo_original>
